<compile_context>
chip_gen: v6e
topology: v6e:2x2x1
jax: 0.10.0
libtpu: 0.0.40
codegen_flags: <defaults>
</compile_context>

<pallas_src>
import functools

import jax
import jax.numpy as jnp
from jax.experimental import pallas as pl
from jax.experimental.pallas import tpu as pltpu


def qnet_kernel(x_ref, w1_ref, w2_ref, b2_ref, w3_ref, b3_ref, o_ref):
    # fc1 (+ folded b1) + ReLU.  x tile is read as f32 and cast in-VMEM to the
    # MXU operand dtype (bf16 by default); accumulation stays f32.
    xc = x_ref[...].astype(w1_ref.dtype)
    h1 = jnp.dot(xc, w1_ref[...], preferred_element_type=jnp.float32)
    h1 = jnp.maximum(h1, 0.0)

    # fc2 + bias + ReLU.
    h2 = jnp.dot(h1.astype(w2_ref.dtype), w2_ref[...],
                 preferred_element_type=jnp.float32)
    h2 = jnp.maximum(h2 + b2_ref[...], 0.0)

    # fc3 + ReLU: (TM,128) x (128,1) head kept OFF the MXU (VPU multiply +
    # cross-lane reduce).  Rows are regrouped so the per-row scalars land
    # lane-dense in the (1, TM//128, 128) output block -> single unmasked vst.
    n_sub, lanes = o_ref.shape[1], o_ref.shape[2]
    w3_row = w3_ref[...].astype(jnp.float32)                 # (1, 128)
    h2_blk = h2.reshape(n_sub, lanes, h2.shape[-1])          # (n_sub, 128, 128)
    q = jnp.sum(h2_blk * w3_row, axis=-1) + b3_ref[0, 0]     # (n_sub, 128)
    q = jnp.maximum(q, 0.0)
    o_ref[...] = q[None].astype(o_ref.dtype)                 # (1, n_sub, 128)


def pack_params(w1, b1, w2, b2, w3, b3, *, compute_dtype=jnp.bfloat16):
    """(in,out)-layout params -> kernel layout, pre-cast/pre-shaped once.

    - pad fc1's input dim to a multiple of 8 leaving >= 1 spare row; the bias
      b1 is stored in row `state_dim` (the wrapper feeds a constant 1.0 in the
      matching x column), so the fc1 bias add happens on the MXU,
    - fc2 weights and the 128->1 head (as a (1,128) row) are pre-cast to the
      MXU operand dtype,
    - b2 stays an f32 (1,128) VMEM row; b3 an f32 (1,1) SMEM scalar.
    """
    k, h = w1.shape
    k_pad = ((k + 1 + 7) // 8) * 8          # >= k+1, multiple of 8 (29 -> 32)
    w1p = jnp.zeros((k_pad, h), jnp.float32)
    w1p = w1p.at[:k].set(w1.astype(jnp.float32))
    w1p = w1p.at[k].set(b1.reshape(h).astype(jnp.float32))   # folded bias row
    return (
        w1p.astype(compute_dtype),                    # (k_pad, 128)
        w2.astype(compute_dtype),                     # (128, 128)
        b2.reshape(1, h).astype(jnp.float32),         # (1, 128)
        w3.reshape(1, h).astype(compute_dtype),       # (1, 128) head row
        b3.reshape(1, 1).astype(jnp.float32),         # (1, 1) SMEM scalar
    )


@functools.partial(jax.jit, static_argnames=("tm_cap",))
def qnetwork_forward(x, packed_params, *, tm_cap=4096):
    """x: (B, state_dim) float32 -> (B, 1) float32."""
    w1, w2, b2, w3_row, b3 = packed_params
    B, K = x.shape
    K_pad, H = w1.shape

    # ---- batch tile selection -------------------------------------------
    # Multiple of 128 (lane-dense output); padding-minimizing; capped at
    # tm_cap rows (f32 activations + double-buffered x tiles stay a few MiB,
    # far under v7x's 64 MiB VMEM); >= 2 grid steps whenever B > 128 so the
    # "parallel" batch axis shards across both v7x TensorCores.
    n_chunks = pl.cdiv(B, 128)
    grid_target = 2 if B > 128 else 1
    chunks_per_tile = max(1, min(tm_cap // 128, pl.cdiv(n_chunks, grid_target)))
    tm = 128 * chunks_per_tile
    grid_b = pl.cdiv(n_chunks, chunks_per_tile)
    b_pad = grid_b * tm
    n_sub = tm // 128

    # ---- pad features / batch; feed the folded-b1 column -----------------
    xp = jnp.pad(x, ((0, b_pad - B), (0, K_pad - K)))
    xp = xp.at[:, K].set(1.0)     # constant-1 column multiplying the b1 row

    out = pl.pallas_call(
        qnet_kernel,
        out_shape=jax.ShapeDtypeStruct((grid_b, n_sub, 128), jnp.float32),
        grid=(grid_b,),
        in_specs=[
            pl.BlockSpec((tm, K_pad), lambda i: (i, 0)),      # x tile (f32), moves
            pl.BlockSpec((K_pad, H), lambda i: (0, 0)),       # w1 (+b1), resident
            pl.BlockSpec((H, H), lambda i: (0, 0)),           # w2, resident
            pl.BlockSpec((1, H), lambda i: (0, 0)),           # b2
            pl.BlockSpec((1, H), lambda i: (0, 0)),           # w3 row
            pl.BlockSpec((1, 1), lambda i: (0, 0),
                         memory_space=pltpu.MemorySpace.SMEM),  # b3 scalar
        ],
        out_specs=pl.BlockSpec((1, n_sub, 128), lambda i: (i, 0, 0)),
        compiler_params=pltpu.CompilerParams(
            dimension_semantics=("parallel",),
            vmem_limit_bytes=32 * 1024 * 1024,
        ),
    )(xp, w1, w2, b2, w3_row, b3)

    return out.reshape(b_pad, 1)[:B]


def init_params(key, state_dim):
    """Deterministic init mimicking nn.Linear's uniform(-1/sqrt(fan_in), +).

    Weights stored (in_features, out_features), biases (out_features,).
    """
    ks = jax.random.split(key, 6)

    def linear(kw, kb, fan_in, fan_out):
        bound = 1.0 / jnp.sqrt(jnp.float32(fan_in))
        w = jax.random.uniform(kw, (fan_in, fan_out), jnp.float32, -bound, bound)
        b = jax.random.uniform(kb, (fan_out,), jnp.float32, -bound, bound)
        return w, b

    w1, b1 = linear(ks[0], ks[1], state_dim, 128)
    w2, b2 = linear(ks[2], ks[3], 128, 128)
    w3, b3 = linear(ks[4], ks[5], 128, 1)
    return (w1, b1, w2, b2, w3, b3)


def reference_forward(x, raw_params):
    w1, b1, w2, b2, w3, b3 = raw_params
    h = jnp.maximum(x @ w1 + b1, 0.0)
    h = jnp.maximum(h @ w2 + b2, 0.0)
    return jnp.maximum(h @ w3 + b3, 0.0)


if __name__ == "__main__":
    # Ant-with-goal state: len(qpos) + len(qvel); use a constant here.
    # TODO(synk): the mujoco model load (state_dim derivation) has no Pallas
    # equivalent; replaced with a constant.
    STATE_DIM = 29
    BATCH = 8

    key = jax.random.PRNGKey(0)
    k_params, k_x, k_x2 = jax.random.split(key, 3)

    raw_params = init_params(k_params, STATE_DIM)
    x = jax.random.normal(k_x, (BATCH, STATE_DIM), jnp.float32)
    ref = reference_forward(x, raw_params)

    # Default (bf16 MXU operands, f32 accumulation) path.
    packed_bf16 = pack_params(*raw_params)                       # bf16 default
    out = jax.block_until_ready(qnetwork_forward(x, packed_bf16))
    assert out.shape == (BATCH, 1)
    assert jnp.allclose(out, ref, atol=5e-2, rtol=5e-2)

    # f32-operand path (debug/accuracy) — tight tolerance.
    packed_f32 = pack_params(*raw_params, compute_dtype=jnp.float32)
    out_f32 = jax.block_until_ready(qnetwork_forward(x, packed_f32))
    assert jnp.allclose(out_f32, ref, atol=1e-4, rtol=1e-4)

    # Multi-tile path (exercises grid_b >= 2, batch padding + slicing).
    x2 = jax.random.normal(k_x2, (300, STATE_DIM), jnp.float32)
    ref2 = reference_forward(x2, raw_params)
    out2 = jax.block_until_ready(qnetwork_forward(x2, packed_bf16))
    assert out2.shape == (300, 1)
    assert jnp.allclose(out2, ref2, atol=5e-2, rtol=5e-2)

    print("KERNEL_OK")
</pallas_src>

<mosaic_0001>
module attributes {stable_mosaic.version = 11 : i64} {
  func.func @qnet_kernel(%arg0: i32, %arg1: memref<128x32xf32, #tpu.memory_space<vmem>>, %arg2: memref<32x128xbf16, #tpu.memory_space<vmem>>, %arg3: memref<128x128xbf16, #tpu.memory_space<vmem>>, %arg4: memref<1x128xf32, #tpu.memory_space<vmem>>, %arg5: memref<1x128xbf16, #tpu.memory_space<vmem>>, %arg6: memref<1x1xf32, #tpu.memory_space<smem>>, %arg7: memref<1x1x128xf32, #tpu.memory_space<vmem>>) attributes {dimension_semantics = [#tpu.dimension_semantics<parallel>], iteration_bounds = array<i64: 1>, scalar_prefetch = 0 : i64, scratch_operands = 0 : i64, tpu.core_type = #tpu.core_type<tc>, window_params = [{transform_indices = @transform_0, window_bounds = array<i64: 128, 32>}, {pipeline_mode = #tpu.pipeline_mode<synchronous>, transform_indices = @transform_1, window_bounds = array<i64: 32, 128>}, {pipeline_mode = #tpu.pipeline_mode<synchronous>, transform_indices = @transform_2, window_bounds = array<i64: 128, 128>}, {pipeline_mode = #tpu.pipeline_mode<synchronous>, transform_indices = @transform_3, window_bounds = array<i64: 1, 128>}, {pipeline_mode = #tpu.pipeline_mode<synchronous>, transform_indices = @transform_4, window_bounds = array<i64: 1, 128>}, {transform_indices = @transform_5, window_bounds = array<i64: 1, 1>}, {transform_indices = @transform_6, window_bounds = array<i64: 1, 1, 128>}]} {
    %c0 = arith.constant 0 : index
    %c0_0 = arith.constant 0 : index
    %0 = vector.load %arg1[%c0, %c0_0] : memref<128x32xf32, #tpu.memory_space<vmem>>, vector<128x32xf32>
    %1 = arith.truncf %0 : vector<128x32xf32> to vector<128x32xbf16>
    %c0_1 = arith.constant 0 : index
    %c0_2 = arith.constant 0 : index
    %2 = vector.load %arg2[%c0_1, %c0_2] : memref<32x128xbf16, #tpu.memory_space<vmem>>, vector<32x128xbf16>
    %cst = arith.constant dense<0.000000e+00> : vector<128x128xf32>
    %3 = tpu.matmul %1, %2, %cst {dimension_numbers = #tpu.dot_dimension_numbers<[1], [0], [0], [1], [0, 0, 1, 1], [], []>} : vector<128x32xbf16>, vector<32x128xbf16>, vector<128x128xf32> -> vector<128x128xf32>
    %cst_3 = arith.constant 0.000000e+00 : f32
    %4 = vector.broadcast %cst_3 : f32 to vector<128x128xf32>
    %5 = arith.maximumf %3, %4 : vector<128x128xf32>
    %6 = arith.truncf %5 : vector<128x128xf32> to vector<128x128xbf16>
    %c0_4 = arith.constant 0 : index
    %c0_5 = arith.constant 0 : index
    %7 = vector.load %arg3[%c0_4, %c0_5] : memref<128x128xbf16, #tpu.memory_space<vmem>>, vector<128x128xbf16>
    %cst_6 = arith.constant dense<0.000000e+00> : vector<128x128xf32>
    %8 = tpu.matmul %6, %7, %cst_6 {dimension_numbers = #tpu.dot_dimension_numbers<[1], [0], [0], [1], [0, 0, 1, 1], [], []>} : vector<128x128xbf16>, vector<128x128xbf16>, vector<128x128xf32> -> vector<128x128xf32>
    %c0_7 = arith.constant 0 : index
    %c0_8 = arith.constant 0 : index
    %9 = vector.load %arg4[%c0_7, %c0_8] : memref<1x128xf32, #tpu.memory_space<vmem>>, vector<1x128xf32>
    %10 = vector.broadcast %9 : vector<1x128xf32> to vector<128x128xf32>
    %11 = arith.addf %8, %10 : vector<128x128xf32>
    %cst_9 = arith.constant 0.000000e+00 : f32
    %12 = vector.broadcast %cst_9 : f32 to vector<128x128xf32>
    %13 = arith.maximumf %11, %12 : vector<128x128xf32>
    %c0_10 = arith.constant 0 : index
    %c0_11 = arith.constant 0 : index
    %14 = vector.load %arg5[%c0_10, %c0_11] : memref<1x128xbf16, #tpu.memory_space<vmem>>, vector<1x128xbf16>
    %15 = arith.extf %14 : vector<1x128xbf16> to vector<1x128xf32>
    %16 = vector.shape_cast %13 : vector<128x128xf32> to vector<1x128x128xf32>
    %17 = vector.shape_cast %15 : vector<1x128xf32> to vector<1x1x128xf32>
    %18 = vector.broadcast %17 : vector<1x1x128xf32> to vector<1x128x128xf32>
    %19 = arith.mulf %16, %18 : vector<1x128x128xf32>
    %cst_12 = arith.constant dense<0.000000e+00> : vector<1x128xf32>
    %20 = vector.multi_reduction <add>, %19, %cst_12 [2] : vector<1x128x128xf32> to vector<1x128xf32>
    %c0_13 = arith.constant 0 : index
    %c0_14 = arith.constant 0 : index
    %21 = memref.load %arg6[%c0_13, %c0_14] : memref<1x1xf32, #tpu.memory_space<smem>>
    %22 = vector.broadcast %21 : f32 to vector<1x128xf32>
    %23 = arith.addf %20, %22 : vector<1x128xf32>
    %cst_15 = arith.constant 0.000000e+00 : f32
    %24 = vector.broadcast %cst_15 : f32 to vector<1x128xf32>
    %25 = arith.maximumf %23, %24 : vector<1x128xf32>
    %26 = vector.shape_cast %25 : vector<1x128xf32> to vector<1x1x128xf32>
    %c0_16 = arith.constant 0 : index
    %c0_17 = arith.constant 0 : index
    %c0_18 = arith.constant 0 : index
    %27 = vector.load %arg7[%c0_16, %c0_17, %c0_18] : memref<1x1x128xf32, #tpu.memory_space<vmem>>, vector<1x1x128xf32>
    tpu.vector_store %arg7[%c0_16, %c0_17, %c0_18], %26 {strides = array<i32>} : memref<1x1x128xf32, #tpu.memory_space<vmem>>, vector<1x1x128xf32>,
    return
  }
  func.func @transform_0(%arg0: i32) -> (i32, i32) {
    %c0_i32 = arith.constant 0 : i32
    %c0_i32_0 = arith.constant 0 : i32
    return %arg0, %c0_i32 : i32, i32
  }
  func.func @transform_1(%arg0: i32) -> (i32, i32) {
    %c0_i32 = arith.constant 0 : i32
    %c0_i32_0 = arith.constant 0 : i32
    %c0_i32_1 = arith.constant 0 : i32
    return %c0_i32, %c0_i32_0 : i32, i32
  }
  func.func @transform_2(%arg0: i32) -> (i32, i32) {
    %c0_i32 = arith.constant 0 : i32
    %c0_i32_0 = arith.constant 0 : i32
    %c0_i32_1 = arith.constant 0 : i32
    return %c0_i32, %c0_i32_0 : i32, i32
  }
  func.func @transform_3(%arg0: i32) -> (i32, i32) {
    %c0_i32 = arith.constant 0 : i32
    %c0_i32_0 = arith.constant 0 : i32
    %c0_i32_1 = arith.constant 0 : i32
    return %c0_i32, %c0_i32_0 : i32, i32
  }
  func.func @transform_4(%arg0: i32) -> (i32, i32) {
    %c0_i32 = arith.constant 0 : i32
    %c0_i32_0 = arith.constant 0 : i32
    %c0_i32_1 = arith.constant 0 : i32
    return %c0_i32, %c0_i32_0 : i32, i32
  }
  func.func @transform_5(%arg0: i32) -> (i32, i32) {
    %c0_i32 = arith.constant 0 : i32
    %c0_i32_0 = arith.constant 0 : i32
    %c0_i32_1 = arith.constant 0 : i32
    return %c0_i32, %c0_i32_0 : i32, i32
  }
  func.func @transform_6(%arg0: i32) -> (i32, i32, i32) {
    %c0_i32 = arith.constant 0 : i32
    %c0_i32_0 = arith.constant 0 : i32
    %c0_i32_1 = arith.constant 0 : i32
    return %arg0, %c0_i32, %c0_i32_0 : i32, i32, i32
  }
}

</mosaic_0001>

<llo_original>
// kernel: qnetwork_forward.1
$region0: #{qnetwork_forward.1}
  #allocation0 [shape = 'u32[]', space=smem, size = 0x4, offset = 0x4, fixed_abs, tag = 'smem constant byte address 0x4 - core index']
  #allocation1 [shape = 'u32[144,128]{1,0:T(1,128)}', space=vmem, size = 0x12000, scoped, tag = 'internal scratch']
  #allocation2 [shape = 'f32[1,1]{1,0:T(1,128)S(6)}', space=smem, size = 0x200, scoped, tag = 'scoped memory for qnetwork_forward.1']
  %s0 = inlined_call_operand.vmem [shape: f32[128,32], index: 0, kind: input, shape index: {}]
  %s1 = inlined_call_operand.vmem [shape: bf16[32,128], index: 1, kind: input, shape index: {}]
  %s2 = inlined_call_operand.vmem [shape: bf16[128,128], index: 2, kind: input, shape index: {}]
  %s3 = inlined_call_operand.vmem [shape: f32[1,128], index: 3, kind: input, shape index: {}]
  %s4 = inlined_call_operand.vmem [shape: bf16[1,128], index: 4, kind: input, shape index: {}]
  %s5 = inlined_call_operand.<no memory space> [shape: f32[1,1], index: 5, kind: input, shape index: {}]
  %s6 = inlined_call_operand.vmem [shape: f32[1,1,128], index: 6, kind: output, shape index: {}]
  %s7 = sld [smem:[#allocation0]]
  $region34: #{qnetwork_forward.1} parent=0
    _
  %s9 = ssub.s32 1, %s7
  %s10 = scalar_select 0, %s9, %s7
  %11 = sst [smem:[#allocation2]] %s5
  // Predicated region
  $region2: #{qnetwork_forward.1} parent=0 // pred_check
    _
  $region3: #{qnetwork_forward.1} parent=0 // pred_check_branch
    %13 = sbr.rel (0) target = $region5
  $region4: #{qnetwork_forward.1} parent=0 // pred_region
    _
  $region5: #{qnetwork_forward.1} parent=0 // pred_fallthru
    _
  // Predicated region
  $region6: #{qnetwork_forward.1} parent=0 // pred_check
    _
  $region7: #{qnetwork_forward.1} parent=0 // pred_check_branch
    %15 = sbr.rel (0) target = $region9
  $region8: #{qnetwork_forward.1} parent=0 // pred_region
    _
  $region9: #{qnetwork_forward.1} parent=0 // pred_fallthru
    _
  // Predicated region
  $region10: #{qnetwork_forward.1} parent=0 // pred_check
    _
  $region11: #{qnetwork_forward.1} parent=0 // pred_check_branch
    %17 = sbr.rel (0) target = $region13
  $region12: #{qnetwork_forward.1} parent=0 // pred_region
    _
  $region13: #{qnetwork_forward.1} parent=0 // pred_fallthru
    _
  // Predicated region
  $region14: #{qnetwork_forward.1} parent=0 // pred_check
    _
  $region15: #{qnetwork_forward.1} parent=0 // pred_check_branch
    %19 = sbr.rel (0) target = $region17
  $region16: #{qnetwork_forward.1} parent=0 // pred_region
    _
  $region17: #{qnetwork_forward.1} parent=0 // pred_fallthru
    _
  // Predicated region
  $region18: #{qnetwork_forward.1} parent=0 // pred_check
    _
  $region19: #{qnetwork_forward.1} parent=0 // pred_check_branch
    %21 = sbr.rel (0) target = $region21
  $region20: #{qnetwork_forward.1} parent=0 // pred_region
    _
  $region21: #{qnetwork_forward.1} parent=0 // pred_fallthru
    _
  // Predicated region
  $region22: #{qnetwork_forward.1} parent=0 // pred_check
    _
  $region23: #{qnetwork_forward.1} parent=0 // pred_check_branch
    %23 = sbr.rel (0) target = $region25
  $region24: #{qnetwork_forward.1} parent=0 // pred_region
    _
  $region25: #{qnetwork_forward.1} parent=0 // pred_fallthru
    _
  %v25 = vld [vmem:[%s0] sm:$0xff]
  %v26 = vld [vmem:[%s0 + $0x8] sm:$0xff]
  %v27 = vld [vmem:[%s0 + $0x10] sm:$0xff]
  %v28 = vld [vmem:[%s0 + $0x18] sm:$0xff]
  %v29 = vld [vmem:[%s0 + $0x20] sm:$0xff]
  %v30 = vld [vmem:[%s0 + $0x28] sm:$0xff]
  %v31 = vld [vmem:[%s0 + $0x30] sm:$0xff]
  %v32 = vld [vmem:[%s0 + $0x38] sm:$0xff]
  %v33 = vld [vmem:[%s0 + $0x40] sm:$0xff]
  %v34 = vld [vmem:[%s0 + $0x48] sm:$0xff]
  %v35 = vld [vmem:[%s0 + $0x50] sm:$0xff]
  %v36 = vld [vmem:[%s0 + $0x58] sm:$0xff]
  %v37 = vld [vmem:[%s0 + $0x60] sm:$0xff]
  %v38 = vld [vmem:[%s0 + $0x68] sm:$0xff]
  %v39 = vld [vmem:[%s0 + $0x70] sm:$0xff]
  %v40 = vld [vmem:[%s0 + $0x78] sm:$0xff]
  %v41 = vpack.c.bf16 %v26, %v25
  %v42 = vpack.c.bf16 %v28, %v27
  %v43 = vpack.c.bf16 %v30, %v29
  %v44 = vpack.c.bf16 %v32, %v31
  %v45 = vpack.c.bf16 %v34, %v33
  %v46 = vpack.c.bf16 %v36, %v35
  %v47 = vpack.c.bf16 %v38, %v37
  %v48 = vpack.c.bf16 %v40, %v39
  %v49 = vld [vmem:[%s1] sm:$0xf]
  %v50 = vld [vmem:[%s1 + $0x4] sm:$0xf]
  %v51 = vld [vmem:[%s1 + $0x8] sm:$0xf]
  %v52 = vld [vmem:[%s1 + $0xc] sm:$0xf]
  %v57 = vunpack.c.l.b16 %v49
  %v58 = vunpack.c.l.b16 %v50
  %v59 = vunpack.c.l.b16 %v51
  %v60 = vunpack.c.l.b16 %v52
  %v61 = vpack.c.b16 %v58, %v57
  %v62 = vpack.c.b16 %v60, %v59
  %vm65 = vcmask 261120
  %v67 = vsel %vm65, %v41, 0
  %v70 = vsel %vm65, %v42, 0
  %v73 = vsel %vm65, %v43, 0
  %v76 = vsel %vm65, %v44, 0
  %v79 = vsel %vm65, %v45, 0
  %v82 = vsel %vm65, %v46, 0
  %v85 = vsel %vm65, %v47, 0
  %v88 = vsel %vm65, %v48, 0
  %90 = vmatprep.subr.bf16.mxu0 0
  %91 = vmatpush1.bf16.msra.mxu0 0
  %92 = vmatprep.subr.bf16.mxu0 0
  %93 = vmatpush1.bf16.msra.mxu0 0
  %94 = vmatprep.subr.bf16.mxu0 0
  %95 = vmatpush1.bf16.msra.mxu0 0
  %96 = vmatprep.subr.bf16.mxu0 0
  %97 = vmatpush1.bf16.msra.mxu0 0
  %98 = vmatprep.subr.bf16.mxu0 0
  %99 = vmatpush1.bf16.msra.mxu0 0
  %100 = vmatprep.subr.bf16.mxu0 0
  %101 = vmatpush1.bf16.msra.mxu0 0
  %102 = vmatprep.subr.bf16.mxu0 0
  %103 = vmatpush1.bf16.msra.mxu0 %v62
  %104 = vmatprep.subr.bf16.mxu0 0
  %105 = vmatpush1.bf16.msra.mxu0 %v61
  %106 = vmatprep.subr.bf16.mxu0 0
  %107 = vmatpush2.bf16.msra.mxu0 0
  %108 = vmatprep.subr.bf16.mxu0 0
  %109 = vmatpush2.bf16.msra.mxu0 0
  %110 = vmatprep.subr.bf16.mxu0 0
  %111 = vmatpush2.bf16.msra.mxu0 0
  %112 = vmatprep.subr.bf16.mxu0 0
  %113 = vmatpush2.bf16.msra.mxu0 0
  %114 = vmatprep.subr.bf16.mxu0 0
  %115 = vmatpush2.bf16.msra.mxu0 0
  %116 = vmatprep.subr.bf16.mxu0 0
  %117 = vmatpush2.bf16.msra.mxu0 0
  %118 = vmatprep.subr.bf16.mxu0 0
  %119 = vmatpush2.bf16.msra.mxu0 0
  %120 = vmatprep.subr.bf16.mxu0 0
  %121 = vmatpush2.bf16.msra.mxu0 0
  %122 = vmatprep.mubr.bf16.mxu0 0
  %123 = vmatmul.mubr.bf16.gmra.mxu0 %v67
  %v124 = vpop.f32.mrf.mxu0
  %v125 = vadd.f32 0.0, %v124
  %v126 = vpop.f32.mrf.mxu0
  %v127 = vpop.f32.mrf.mxu0
  %v128 = vadd.f32 0.0, %v127
  %v129 = vpop.f32.mrf.mxu0
  %130 = vmatprep.mubr.bf16.mxu0 0
  %131 = vmatmul.mubr.bf16.gmra.mxu0 %v70
  %v132 = vpop.f32.mrf.mxu0
  %v133 = vadd.f32 0.0, %v132
  %v134 = vpop.f32.mrf.mxu0
  %v135 = vpop.f32.mrf.mxu0
  %v136 = vadd.f32 0.0, %v135
  %v137 = vpop.f32.mrf.mxu0
  %138 = vmatprep.mubr.bf16.mxu0 0
  %139 = vmatmul.mubr.bf16.gmra.mxu0 %v73
  %v140 = vpop.f32.mrf.mxu0
  %v141 = vadd.f32 0.0, %v140
  %v142 = vpop.f32.mrf.mxu0
  %v143 = vpop.f32.mrf.mxu0
  %v144 = vadd.f32 0.0, %v143
  %v145 = vpop.f32.mrf.mxu0
  %146 = vmatprep.mubr.bf16.mxu0 0
  %147 = vmatmul.mubr.bf16.gmra.mxu0 %v76
  %v148 = vpop.f32.mrf.mxu0
  %v149 = vadd.f32 0.0, %v148
  %v150 = vpop.f32.mrf.mxu0
  %v151 = vpop.f32.mrf.mxu0
  %v152 = vadd.f32 0.0, %v151
  %v153 = vpop.f32.mrf.mxu0
  %154 = vmatprep.mubr.bf16.mxu0 0
  %155 = vmatmul.mubr.bf16.gmra.mxu0 %v79
  %v156 = vpop.f32.mrf.mxu0
  %v157 = vadd.f32 0.0, %v156
  %v158 = vpop.f32.mrf.mxu0
  %v159 = vpop.f32.mrf.mxu0
  %v160 = vadd.f32 0.0, %v159
  %v161 = vpop.f32.mrf.mxu0
  %162 = vmatprep.mubr.bf16.mxu0 0
  %163 = vmatmul.mubr.bf16.gmra.mxu0 %v82
  %v164 = vpop.f32.mrf.mxu0
  %v165 = vadd.f32 0.0, %v164
  %v166 = vpop.f32.mrf.mxu0
  %v167 = vpop.f32.mrf.mxu0
  %v168 = vadd.f32 0.0, %v167
  %v169 = vpop.f32.mrf.mxu0
  %170 = vmatprep.mubr.bf16.mxu0 0
  %171 = vmatmul.mubr.bf16.gmra.mxu0 %v85
  %v172 = vpop.f32.mrf.mxu0
  %v173 = vadd.f32 0.0, %v172
  %v174 = vpop.f32.mrf.mxu0
  %v175 = vpop.f32.mrf.mxu0
  %v176 = vadd.f32 0.0, %v175
  %v177 = vpop.f32.mrf.mxu0
  %178 = vmatprep.mubr.bf16.mxu0 0
  %179 = vmatmul.mubr.bf16.gmra.mxu0 %v88
  %v180 = vpop.f32.mrf.mxu0
  %v181 = vadd.f32 0.0, %v180
  %v182 = vpop.f32.mrf.mxu0
  %v183 = vpop.f32.mrf.mxu0
  %v184 = vadd.f32 0.0, %v183
  %v185 = vpop.f32.mrf.mxu0
  %186 = vdwg.mxu0
  %v187 = vmax.f32 %v125, 0.0
  %v188 = vmax.f32 %v128, 0.0
  %v189 = vmax.f32 %v133, 0.0
  %v190 = vmax.f32 %v136, 0.0
  %v191 = vmax.f32 %v141, 0.0
  %v192 = vmax.f32 %v144, 0.0
  %v193 = vmax.f32 %v149, 0.0
  %v194 = vmax.f32 %v152, 0.0
  %v195 = vmax.f32 %v157, 0.0
  %v196 = vmax.f32 %v160, 0.0
  %v197 = vmax.f32 %v165, 0.0
  %v198 = vmax.f32 %v168, 0.0
  %v199 = vmax.f32 %v173, 0.0
  %v200 = vmax.f32 %v176, 0.0
  %v201 = vmax.f32 %v181, 0.0
  %v202 = vmax.f32 %v184, 0.0
  %v203 = vpack.c.bf16 %v188, %v187
  %v204 = vpack.c.bf16 %v190, %v189
  %v205 = vpack.c.bf16 %v192, %v191
  %v206 = vpack.c.bf16 %v194, %v193
  %v207 = vpack.c.bf16 %v196, %v195
  %v208 = vpack.c.bf16 %v198, %v197
  %v209 = vpack.c.bf16 %v200, %v199
  %v210 = vpack.c.bf16 %v202, %v201
  %v211 = vld [vmem:[%s2] sm:$0xf]
  %v212 = vld [vmem:[%s2 + $0x4] sm:$0xf]
  %v213 = vld [vmem:[%s2 + $0x8] sm:$0xf]
  %v214 = vld [vmem:[%s2 + $0xc] sm:$0xf]
  %v215 = vld [vmem:[%s2 + $0x10] sm:$0xf]
  %v216 = vld [vmem:[%s2 + $0x14] sm:$0xf]
  %v217 = vld [vmem:[%s2 + $0x18] sm:$0xf]
  %v218 = vld [vmem:[%s2 + $0x1c] sm:$0xf]
  %v219 = vld [vmem:[%s2 + $0x20] sm:$0xf]
  %v220 = vld [vmem:[%s2 + $0x24] sm:$0xf]
  %v221 = vld [vmem:[%s2 + $0x28] sm:$0xf]
  %v222 = vld [vmem:[%s2 + $0x2c] sm:$0xf]
  %v223 = vld [vmem:[%s2 + $0x30] sm:$0xf]
  %v224 = vld [vmem:[%s2 + $0x34] sm:$0xf]
  %v225 = vld [vmem:[%s2 + $0x38] sm:$0xf]
  %v226 = vld [vmem:[%s2 + $0x3c] sm:$0xf]
  %v227 = vld [vmem:[%s3] sm:$0x1]
  %v229 = vlaneseq
  %v230 = vshrl.u32 %v229, 7
  %v231 = vsub.s32 0, %v230
  %v232 = vrot.slane %v227, %v231
  %v250 = vunpack.c.l.b16 %v211
  %v251 = vunpack.c.l.b16 %v212
  %v252 = vunpack.c.l.b16 %v213
  %v253 = vunpack.c.l.b16 %v214
  %v254 = vunpack.c.l.b16 %v215
  %v255 = vunpack.c.l.b16 %v216
  %v256 = vunpack.c.l.b16 %v217
  %v257 = vunpack.c.l.b16 %v218
  %v258 = vunpack.c.l.b16 %v219
  %v259 = vunpack.c.l.b16 %v220
  %v260 = vunpack.c.l.b16 %v221
  %v261 = vunpack.c.l.b16 %v222
  %v262 = vunpack.c.l.b16 %v223
  %v263 = vunpack.c.l.b16 %v224
  %v264 = vunpack.c.l.b16 %v225
  %v265 = vunpack.c.l.b16 %v226
  %v266 = vpack.c.b16 %v251, %v250
  %v267 = vpack.c.b16 %v253, %v252
  %v268 = vpack.c.b16 %v255, %v254
  %v269 = vpack.c.b16 %v257, %v256
  %v270 = vpack.c.b16 %v259, %v258
  %v271 = vpack.c.b16 %v261, %v260
  %v272 = vpack.c.b16 %v263, %v262
  %v273 = vpack.c.b16 %v265, %v264
  %282 = vmatprep.subr.bf16.mxu0 0
  %283 = vmatpush1.bf16.msra.mxu0 %v273
  %284 = vmatprep.subr.bf16.mxu0 0
  %285 = vmatpush1.bf16.msra.mxu0 %v272
  %286 = vmatprep.subr.bf16.mxu0 0
  %287 = vmatpush1.bf16.msra.mxu0 %v271
  %288 = vmatprep.subr.bf16.mxu0 0
  %289 = vmatpush1.bf16.msra.mxu0 %v270
  %290 = vmatprep.subr.bf16.mxu0 0
  %291 = vmatpush1.bf16.msra.mxu0 %v269
  %292 = vmatprep.subr.bf16.mxu0 0
  %293 = vmatpush1.bf16.msra.mxu0 %v268
  %294 = vmatprep.subr.bf16.mxu0 0
  %295 = vmatpush1.bf16.msra.mxu0 %v267
  %296 = vmatprep.subr.bf16.mxu0 0
  %297 = vmatpush1.bf16.msra.mxu0 %v266
  %298 = vmatprep.subr.bf16.mxu0 0
  %299 = vmatpush2.bf16.msra.mxu0 0
  %300 = vmatprep.subr.bf16.mxu0 0
  %301 = vmatpush2.bf16.msra.mxu0 0
  %302 = vmatprep.subr.bf16.mxu0 0
  %303 = vmatpush2.bf16.msra.mxu0 0
  %304 = vmatprep.subr.bf16.mxu0 0
  %305 = vmatpush2.bf16.msra.mxu0 0
  %306 = vmatprep.subr.bf16.mxu0 0
  %307 = vmatpush2.bf16.msra.mxu0 0
  %308 = vmatprep.subr.bf16.mxu0 0
  %309 = vmatpush2.bf16.msra.mxu0 0
  %310 = vmatprep.subr.bf16.mxu0 0
  %311 = vmatpush2.bf16.msra.mxu0 0
  %312 = vmatprep.subr.bf16.mxu0 0
  %313 = vmatpush2.bf16.msra.mxu0 0
  %314 = vmatprep.mubr.bf16.mxu0 0
  %315 = vmatmul.mubr.bf16.gmra.mxu0 %v203
  %v316 = vpop.f32.mrf.mxu0
  %v317 = vadd.f32 %v232, %v316
  %v318 = vpop.f32.mrf.mxu0
  %v319 = vpop.f32.mrf.mxu0
  %v320 = vadd.f32 %v232, %v319
  %v321 = vpop.f32.mrf.mxu0
  %322 = vmatprep.mubr.bf16.mxu0 0
  %323 = vmatmul.mubr.bf16.gmra.mxu0 %v204
  %v324 = vpop.f32.mrf.mxu0
  %v325 = vadd.f32 %v232, %v324
  %v326 = vpop.f32.mrf.mxu0
  %v327 = vpop.f32.mrf.mxu0
  %v328 = vadd.f32 %v232, %v327
  %v329 = vpop.f32.mrf.mxu0
  %330 = vmatprep.mubr.bf16.mxu0 0
  %331 = vmatmul.mubr.bf16.gmra.mxu0 %v205
  %v332 = vpop.f32.mrf.mxu0
  %v333 = vadd.f32 %v232, %v332
  %v334 = vpop.f32.mrf.mxu0
  %v335 = vpop.f32.mrf.mxu0
  %v336 = vadd.f32 %v232, %v335
  %v337 = vpop.f32.mrf.mxu0
  %338 = vmatprep.mubr.bf16.mxu0 0
  %339 = vmatmul.mubr.bf16.gmra.mxu0 %v206
  %v340 = vpop.f32.mrf.mxu0
  %v341 = vadd.f32 %v232, %v340
  %v342 = vpop.f32.mrf.mxu0
  %v343 = vpop.f32.mrf.mxu0
  %v344 = vadd.f32 %v232, %v343
  %v345 = vpop.f32.mrf.mxu0
  %346 = vmatprep.mubr.bf16.mxu0 0
  %347 = vmatmul.mubr.bf16.gmra.mxu0 %v207
  %v348 = vpop.f32.mrf.mxu0
  %v349 = vadd.f32 %v232, %v348
  %v350 = vpop.f32.mrf.mxu0
  %v351 = vpop.f32.mrf.mxu0
  %v352 = vadd.f32 %v232, %v351
  %v353 = vpop.f32.mrf.mxu0
  %354 = vmatprep.mubr.bf16.mxu0 0
  %355 = vmatmul.mubr.bf16.gmra.mxu0 %v208
  %v356 = vpop.f32.mrf.mxu0
  %v357 = vadd.f32 %v232, %v356
  %v358 = vpop.f32.mrf.mxu0
  %v359 = vpop.f32.mrf.mxu0
  %v360 = vadd.f32 %v232, %v359
  %v361 = vpop.f32.mrf.mxu0
  %362 = vmatprep.mubr.bf16.mxu0 0
  %363 = vmatmul.mubr.bf16.gmra.mxu0 %v209
  %v364 = vpop.f32.mrf.mxu0
  %v365 = vadd.f32 %v232, %v364
  %v366 = vpop.f32.mrf.mxu0
  %v367 = vpop.f32.mrf.mxu0
  %v368 = vadd.f32 %v232, %v367
  %v369 = vpop.f32.mrf.mxu0
  %370 = vmatprep.mubr.bf16.mxu0 0
  %371 = vmatmul.mubr.bf16.gmra.mxu0 %v210
  %v372 = vpop.f32.mrf.mxu0
  %v373 = vadd.f32 %v232, %v372
  %v374 = vpop.f32.mrf.mxu0
  %v375 = vpop.f32.mrf.mxu0
  %v376 = vadd.f32 %v232, %v375
  %v377 = vpop.f32.mrf.mxu0
  %378 = vdwg.mxu0
  %v379 = vmax.f32 %v317, 0.0
  %v380 = vmax.f32 %v320, 0.0
  %v381 = vmax.f32 %v325, 0.0
  %v382 = vmax.f32 %v328, 0.0
  %v383 = vmax.f32 %v333, 0.0
  %v384 = vmax.f32 %v336, 0.0
  %v385 = vmax.f32 %v341, 0.0
  %v386 = vmax.f32 %v344, 0.0
  %v387 = vmax.f32 %v349, 0.0
  %v388 = vmax.f32 %v352, 0.0
  %v389 = vmax.f32 %v357, 0.0
  %v390 = vmax.f32 %v360, 0.0
  %v391 = vmax.f32 %v365, 0.0
  %v392 = vmax.f32 %v368, 0.0
  %v393 = vmax.f32 %v373, 0.0
  %v394 = vmax.f32 %v376, 0.0
  %v395 = vld [vmem:[%s4] sm:$0x1]
  %v396 = vunpack.c.l.bf16 %v395
  %v397 = vlaneseq
  %v398 = vshrl.u32 %v397, 7
  %v399 = vsub.s32 0, %v398
  %v400 = vrot.slane %v396, %v399
  %v401 = vmul.f32 %v379, %v400
  %v402 = vmul.f32 %v380, %v400
  %v403 = vmul.f32 %v381, %v400
  %v404 = vmul.f32 %v382, %v400
  %v405 = vmul.f32 %v383, %v400
  %v406 = vmul.f32 %v384, %v400
  %v407 = vmul.f32 %v385, %v400
  %v408 = vmul.f32 %v386, %v400
  %v409 = vmul.f32 %v387, %v400
  %v410 = vmul.f32 %v388, %v400
  %v411 = vmul.f32 %v389, %v400
  %v412 = vmul.f32 %v390, %v400
  %v413 = vmul.f32 %v391, %v400
  %v414 = vmul.f32 %v392, %v400
  %v415 = vmul.f32 %v393, %v400
  %v416 = vmul.f32 %v394, %v400
  %417 = vadd.xlane.f32.xlu0 %v401
  %v418 = vpop.xlane.xlu0 %417
  %419 = vadd.xlane.f32.xlu0 %v402
  %v420 = vpop.xlane.xlu0 %419
  %421 = vadd.xlane.f32.xlu0 %v403
  %v422 = vpop.xlane.xlu0 %421
  %423 = vadd.xlane.f32.xlu0 %v404
  %v424 = vpop.xlane.xlu0 %423
  %425 = vadd.xlane.f32.xlu0 %v405
  %v426 = vpop.xlane.xlu0 %425
  %427 = vadd.xlane.f32.xlu0 %v406
  %v428 = vpop.xlane.xlu0 %427
  %429 = vadd.xlane.f32.xlu0 %v407
  %v430 = vpop.xlane.xlu0 %429
  %431 = vadd.xlane.f32.xlu0 %v408
  %v432 = vpop.xlane.xlu0 %431
  %433 = vadd.xlane.f32.xlu0 %v409
  %v434 = vpop.xlane.xlu0 %433
  %435 = vadd.xlane.f32.xlu0 %v410
  %v436 = vpop.xlane.xlu0 %435
  %437 = vadd.xlane.f32.xlu0 %v411
  %v438 = vpop.xlane.xlu0 %437
  %439 = vadd.xlane.f32.xlu0 %v412
  %v440 = vpop.xlane.xlu0 %439
  %441 = vadd.xlane.f32.xlu0 %v413
  %v442 = vpop.xlane.xlu0 %441
  %443 = vadd.xlane.f32.xlu0 %v414
  %v444 = vpop.xlane.xlu0 %443
  %445 = vadd.xlane.f32.xlu0 %v415
  %v446 = vpop.xlane.xlu0 %445
  %447 = vadd.xlane.f32.xlu0 %v416
  %v448 = vpop.xlane.xlu0 %447
  %s449 = sld [smem:[#allocation2]]
  %v450 = vstv %s449
  %v451 = vadd.f32 %v418, %v450
  %v452 = vadd.f32 %v420, %v450
  %v453 = vadd.f32 %v422, %v450
  %v454 = vadd.f32 %v424, %v450
  %v455 = vadd.f32 %v426, %v450
  %v456 = vadd.f32 %v428, %v450
  %v457 = vadd.f32 %v430, %v450
  %v458 = vadd.f32 %v432, %v450
  %v459 = vadd.f32 %v434, %v450
  %v460 = vadd.f32 %v436, %v450
  %v461 = vadd.f32 %v438, %v450
  %v462 = vadd.f32 %v440, %v450
  %v463 = vadd.f32 %v442, %v450
  %v464 = vadd.f32 %v444, %v450
  %v465 = vadd.f32 %v446, %v450
  %v466 = vadd.f32 %v448, %v450
  %v467 = vmax.f32 %v451, 0.0
  %v468 = vmax.f32 %v452, 0.0
  %v469 = vmax.f32 %v453, 0.0
  %v470 = vmax.f32 %v454, 0.0
  %v471 = vmax.f32 %v455, 0.0
  %v472 = vmax.f32 %v456, 0.0
  %v473 = vmax.f32 %v457, 0.0
  %v474 = vmax.f32 %v458, 0.0
  %v475 = vmax.f32 %v459, 0.0
  %v476 = vmax.f32 %v460, 0.0
  %v477 = vmax.f32 %v461, 0.0
  %v478 = vmax.f32 %v462, 0.0
  %v479 = vmax.f32 %v463, 0.0
  %v480 = vmax.f32 %v464, 0.0
  %v481 = vmax.f32 %v465, 0.0
  %v482 = vmax.f32 %v466, 0.0
  %v499 = vlaneseq
  %v500 = vand.u32 %v499, 127
  %v501 = vlaneseq
  %v502 = vshrl.u32 %v501, 7
  %v503 = vsub.s32 %v500, %v502
  %v504 = vrot.slane %v467, %v503
  %v505 = vadd.s32 %v500, 4294967288
  %v506 = vlaneseq
  %v507 = vshrl.u32 %v506, 7
  %v508 = vsub.s32 %v505, %v507
  %v509 = vrot.slane %v468, %v508
  %vm510 = vcmask 130112
  %v511 = vsel %vm510, %v509, %v504
  %v512 = vadd.s32 %v500, 4294967280
  %v513 = vlaneseq
  %v514 = vshrl.u32 %v513, 7
  %v515 = vsub.s32 %v512, %v514
  %v516 = vrot.slane %v469, %v515
  %vm517 = vcmask 195712
  %v518 = vsel %vm517, %v516, %v511
  %v519 = vadd.s32 %v500, 4294967272
  %v520 = vlaneseq
  %v521 = vshrl.u32 %v520, 7
  %v522 = vsub.s32 %v519, %v521
  %v523 = vrot.slane %v470, %v522
  %vm524 = vcmask 261312
  %v525 = vsel %vm524, %v523, %v518
  %v526 = vadd.s32 %v500, 4294967264
  %v527 = vlaneseq
  %v528 = vshrl.u32 %v527, 7
  %v529 = vsub.s32 %v526, %v528
  %v530 = vrot.slane %v471, %v529
  %vm531 = vcmask 326912
  %v532 = vsel %vm531, %v530, %v525
  %v533 = vadd.s32 %v500, 4294967256
  %v534 = vlaneseq
  %v535 = vshrl.u32 %v534, 7
  %v536 = vsub.s32 %v533, %v535
  %v537 = vrot.slane %v472, %v536
  %vm538 = vcmask 392512
  %v539 = vsel %vm538, %v537, %v532
  %v540 = vadd.s32 %v500, 4294967248
  %v541 = vlaneseq
  %v542 = vshrl.u32 %v541, 7
  %v543 = vsub.s32 %v540, %v542
  %v544 = vrot.slane %v473, %v543
  %vm545 = vcmask 458112
  %v546 = vsel %vm545, %v544, %v539
  %v547 = vadd.s32 %v500, 4294967240
  %v548 = vlaneseq
  %v549 = vshrl.u32 %v548, 7
  %v550 = vsub.s32 %v547, %v549
  %v551 = vrot.slane %v474, %v550
  %vm552 = vcmask 523712
  %v553 = vsel %vm552, %v551, %v546
  %v554 = vadd.s32 %v500, 4294967232
  %v555 = vlaneseq
  %v556 = vshrl.u32 %v555, 7
  %v557 = vsub.s32 %v554, %v556
  %v558 = vrot.slane %v475, %v557
  %vm559 = vcmask 589312
  %v560 = vsel %vm559, %v558, %v553
  %v561 = vadd.s32 %v500, 4294967224
  %v562 = vlaneseq
  %v563 = vshrl.u32 %v562, 7
  %v564 = vsub.s32 %v561, %v563
  %v565 = vrot.slane %v476, %v564
  %vm566 = vcmask 654912
  %v567 = vsel %vm566, %v565, %v560
  %v568 = vadd.s32 %v500, 4294967216
  %v569 = vlaneseq
  %v570 = vshrl.u32 %v569, 7
  %v571 = vsub.s32 %v568, %v570
  %v572 = vrot.slane %v477, %v571
  %vm573 = vcmask 720512
  %v574 = vsel %vm573, %v572, %v567
  %v575 = vadd.s32 %v500, 4294967208
  %v576 = vlaneseq
  %v577 = vshrl.u32 %v576, 7
  %v578 = vsub.s32 %v575, %v577
  %v579 = vrot.slane %v478, %v578
  %vm580 = vcmask 786112
  %v581 = vsel %vm580, %v579, %v574
  %v582 = vadd.s32 %v500, 4294967200
  %v583 = vlaneseq
  %v584 = vshrl.u32 %v583, 7
  %v585 = vsub.s32 %v582, %v584
  %v586 = vrot.slane %v479, %v585
  %vm587 = vcmask 851712
  %v588 = vsel %vm587, %v586, %v581
  %v589 = vadd.s32 %v500, 4294967192
  %v590 = vlaneseq
  %v591 = vshrl.u32 %v590, 7
  %v592 = vsub.s32 %v589, %v591
  %v593 = vrot.slane %v480, %v592
  %vm594 = vcmask 917312
  %v595 = vsel %vm594, %v593, %v588
  %v596 = vadd.s32 %v500, 4294967184
  %v597 = vlaneseq
  %v598 = vshrl.u32 %v597, 7
  %v599 = vsub.s32 %v596, %v598
  %v600 = vrot.slane %v481, %v599
  %vm601 = vcmask 982912
  %v602 = vsel %vm601, %v600, %v595
  %v603 = vadd.s32 %v500, 4294967176
  %v604 = vlaneseq
  %v605 = vshrl.u32 %v604, 7
  %v606 = vsub.s32 %v603, %v605
  %v607 = vrot.slane %v482, %v606
  %vm608 = vcmask 1048512
  %v609 = vsel %vm608, %v607, %v602
  %611 = vst [vmem:[%s6] sm:$0x1] %v609
  // Predicated region
  $region26: #{qnetwork_forward.1} parent=0 // pred_check
    _
  $region27: #{qnetwork_forward.1} parent=0 // pred_check_branch
    %613 = sbr.rel (0) target = $region29
  $region28: #{qnetwork_forward.1} parent=0 // pred_region
    _
  $region29: #{qnetwork_forward.1} parent=0 // pred_fallthru
    _
  // Predicated region
  $region30: #{qnetwork_forward.1} parent=0 // pred_check
    _
  $region31: #{qnetwork_forward.1} parent=0 // pred_check_branch
    %615 = sbr.rel (0) target = $region33
  $region32: #{qnetwork_forward.1} parent=0 // pred_region
    _
  $region33: #{qnetwork_forward.1} parent=0 // pred_fallthru
    _

</llo_original>
